<compile_context>
chip_gen: v5e
topology: v5e:2x2
jax: 0.10.0
libtpu: 0.0.40
codegen_flags: <defaults>
</compile_context>

<pallas_src>
import functools

import jax
import jax.numpy as jnp
from jax import lax
from jax.experimental import pallas as pl
from jax.experimental.pallas import tpu as pltpu

DROPOUT_P = 0.3
KEEP_PROB = 1.0 - DROPOUT_P
_KEEP_THRESHOLD_24 = int(KEEP_PROB * (1 << 24))  # integer compare vs 24-bit uniform


def _uniform24(row_ids, col_ids, n_cols, seed_u32):
    """Counter-based hash (murmur3 finalizer) -> uniform ints in [0, 2^24).

    Pure jnp integer ops (VPU only): no stateful PRNG, so it lowers on v5e/v6e/v7x and in
    interpret mode, grid iterations stay fully independent ("parallel"), and the seed can be
    a runtime scalar.
    """
    x = (row_ids * jnp.int32(n_cols) + col_ids).astype(jnp.uint32)
    x = x + (seed_u32 * jnp.uint32(0x9E3779B9) + jnp.uint32(0x7F4A7C15))
    x = x ^ (x >> jnp.uint32(16))
    x = x * jnp.uint32(0x85EBCA6B)
    x = x ^ (x >> jnp.uint32(13))
    x = x * jnp.uint32(0xC2B2AE35)
    x = x ^ (x >> jnp.uint32(16))
    return (x >> jnp.uint32(8)).astype(jnp.int32)  # top 24 bits, non-negative int32


def _retrieval_kernel(seed_ref, q_ref, db_ref, w_ref, c_ref, o_ref, *,
                      tn, n_padded, training):
    # seed_ref: (1,)     int32 scalar-prefetch (SMEM) runtime dropout seed
    # q_ref   : (B, D)   bf16 claim embeddings (whole batch, resident across grid)
    # db_ref  : (D, tn)  bf16 contiguous tile of the tile-major DB
    # w_ref   : (1, tn)  f32 per-index Linear(1,1) weights
    # c_ref   : (1, tn)  f32 per-index Linear(1,1) biases
    # o_ref   : (B, tn)  f32
    sim = jnp.dot(q_ref[...], db_ref[...], preferred_element_type=jnp.float32)

    # Per-column scalar Linear(1,1): w[i] * sim[:, i] + c[i]
    aff = sim * w_ref[...] + c_ref[...]

    if training:
        # Dropout(p=0.3), train mode (scaled by 1/keep_prob), stateless per-element hash.
        col = lax.broadcasted_iota(jnp.int32, aff.shape, 1) + pl.program_id(0) * tn
        row = lax.broadcasted_iota(jnp.int32, aff.shape, 0)
        seed_u32 = seed_ref[0].astype(jnp.uint32)
        keep = _uniform24(row, col, n_padded, seed_u32) < jnp.int32(_KEEP_THRESHOLD_24)
        aff = jnp.where(keep, aff * (1.0 / KEEP_PROB), 0.0)

    # ReLU
    o_ref[...] = jnp.maximum(aff, 0.0)


def prepare_db(db_emb, tn):
    """One-time DB prep: bf16, transpose to (D, N), pad N to a multiple of tn, tile-major.

    Returns (db_tiles, n) with db_tiles of shape (n_tiles, D, tn) so each grid step DMAs one
    fully contiguous 2*D*tn-byte slab. Do this once when the .npy DB is loaded.
    """
    n, d = db_emb.shape
    n_tiles = (n + tn - 1) // tn
    n_padded = n_tiles * tn
    db_t = jnp.asarray(db_emb, jnp.bfloat16).T  # (D, N)
    if n_padded != n:
        db_t = jnp.pad(db_t, ((0, 0), (0, n_padded - n)))
    db_tiles = db_t.reshape(d, n_tiles, tn).transpose(1, 0, 2)  # (n_tiles, D, tn)
    return db_tiles, n


def prepare_params(w, c, n_padded):
    """One-time pad of the per-index Linear(1,1) weights/biases to (1, n_padded) f32."""
    n = w.shape[0]
    w2 = jnp.zeros((1, n_padded), jnp.float32).at[0, :n].set(jnp.asarray(w, jnp.float32))
    c2 = jnp.zeros((1, n_padded), jnp.float32).at[0, :n].set(jnp.asarray(c, jnp.float32))
    return w2, c2


@functools.partial(jax.jit, static_argnames=("n_out", "tn", "training"))
def retrieval_head(claim_emb, db_tiles, w2, c2, seed, *, n_out, tn, training=True):
    """Fused (claim @ db.T) -> per-index Linear(1,1) -> Dropout(0.3) -> ReLU.

    `seed` is a runtime scalar: new seeds per training step do not retrace/recompile.
    """
    B, D = claim_emb.shape
    n_tiles, D2, tn2 = db_tiles.shape
    assert D == D2 and tn == tn2
    n_padded = n_tiles * tn
    assert n_out <= n_padded
    assert w2.shape == (1, n_padded) and c2.shape == (1, n_padded)

    q = claim_emb.astype(jnp.bfloat16)                      # tiny (B x D) cast
    seed_arr = jnp.asarray(seed, jnp.int32).reshape((1,))   # scalar-prefetch payload

    kernel = functools.partial(
        _retrieval_kernel, tn=tn, n_padded=n_padded, training=training)

    out = pl.pallas_call(
        kernel,
        out_shape=jax.ShapeDtypeStruct((B, n_padded), jnp.float32),
        grid_spec=pltpu.PrefetchScalarGridSpec(
            num_scalar_prefetch=1,
            grid=(n_tiles,),
            in_specs=[
                pl.BlockSpec((B, D), lambda i, seed_ref: (0, 0)),
                # Tile-major DB: leading dim squeezed, one contiguous slab per step.
                pl.BlockSpec((None, D, tn), lambda i, seed_ref: (i, 0, 0)),
                pl.BlockSpec((1, tn), lambda i, seed_ref: (0, i)),
                pl.BlockSpec((1, tn), lambda i, seed_ref: (0, i)),
            ],
            out_specs=pl.BlockSpec((B, tn), lambda i, seed_ref: (0, i)),
        ),
        compiler_params=pltpu.CompilerParams(
            # Stateless hash -> grid steps independent -> megacore-shardable on v7x.
            dimension_semantics=("parallel",),
            # Production tn=8192, D=1024: double-buffered bf16 DB tile = 32 MiB; keep the
            # limit <= ~56 MiB so v7x (64 MiB VMEM/TC) retains double-buffering.
            vmem_limit_bytes=48 * 1024 * 1024,
        ),
    )(seed_arr, q, db_tiles, w2, c2)

    return out[:, :n_out]


def multimodal_retrieval_forward(claim_emb,
                                 text_db_tiles, n_text, w_text2, c_text2,
                                 image_db_tiles, n_image, w_image2, c_image2,
                                 *, seed, tn, training=True):
    # TODO(synk): BGE-M3 encoding of the raw claim strings has no Pallas equivalent;
    # claim_emb stands in for `self._bge_model.encode(claim_batch)['dense_vecs']`.
    out_text = retrieval_head(claim_emb, text_db_tiles, w_text2, c_text2, 2 * seed + 1,
                              n_out=n_text, tn=tn, training=training)
    out_image = retrieval_head(claim_emb, image_db_tiles, w_image2, c_image2, 2 * seed + 2,
                               n_out=n_image, tn=tn, training=training)
    return out_text, out_image


if __name__ == "__main__":
    key = jax.random.PRNGKey(0)
    ks = jax.random.split(key, 8)

    # Small, kernel-friendly stand-ins (real: D=1024, N_text=82206, N_image=122186, tn=8192).
    # N deliberately NOT multiples of the tile to exercise the padding path.
    B, D = 2, 256
    N_TEXT, N_IMAGE = 300, 500
    TN = 256

    claim_emb = jax.random.normal(ks[0], (B, D), jnp.float32)        # encoded claims
    text_db = jax.random.normal(ks[1], (N_TEXT, D), jnp.float32)     # text_embedding_db
    image_db = jax.random.normal(ks[2], (N_IMAGE, D), jnp.float32)   # image_embedding_db

    # Per-index nn.Linear(1,1) params (PyTorch default init is U(-1, 1) for fan_in=1).
    w_text = jax.random.uniform(ks[3], (N_TEXT,), jnp.float32, -1.0, 1.0)
    c_text = jax.random.uniform(ks[4], (N_TEXT,), jnp.float32, -1.0, 1.0)
    w_image = jax.random.uniform(ks[5], (N_IMAGE,), jnp.float32, -1.0, 1.0)
    c_image = jax.random.uniform(ks[6], (N_IMAGE,), jnp.float32, -1.0, 1.0)

    # One-time prep (bf16 + transpose + pad + tile-major DB; padded w/c) — outside hot path.
    text_db_tiles, n_text = prepare_db(text_db, tn=TN)
    image_db_tiles, n_image = prepare_db(image_db, tn=TN)
    wt2, ct2 = prepare_params(w_text, c_text, text_db_tiles.shape[0] * TN)
    wi2, ci2 = prepare_params(w_image, c_image, image_db_tiles.shape[0] * TN)

    out_text, out_image = multimodal_retrieval_forward(
        claim_emb, text_db_tiles, n_text, wt2, ct2,
        image_db_tiles, n_image, wi2, ci2,
        seed=0, tn=TN, training=True)
    jax.block_until_ready((out_text, out_image))

    # Seed is a runtime scalar: a new per-step seed must reuse the compiled kernel and
    # produce a different dropout mask.
    out_text2, _ = multimodal_retrieval_forward(
        claim_emb, text_db_tiles, n_text, wt2, ct2,
        image_db_tiles, n_image, wi2, ci2,
        seed=1, tn=TN, training=True)
    jax.block_until_ready(out_text2)

    assert out_text.shape == (B, N_TEXT) and out_image.shape == (B, N_IMAGE)
    assert bool(jnp.all(out_text >= 0)) and bool(jnp.all(out_image >= 0))
    assert bool(jnp.any(out_text != out_text2)), "dropout mask did not change with seed"

    # Numerical check vs. pure-JAX reference with dropout disabled (deterministic path).
    out_text_eval = retrieval_head(claim_emb, text_db_tiles, wt2, ct2, 0,
                                   n_out=N_TEXT, tn=TN, training=False)
    sim_ref = jnp.dot(claim_emb.astype(jnp.bfloat16),
                      text_db.astype(jnp.bfloat16).T,
                      preferred_element_type=jnp.float32)
    ref = jnp.maximum(sim_ref * w_text[None, :] + c_text[None, :], 0.0)
    assert bool(jnp.allclose(out_text_eval, ref, atol=2e-2, rtol=2e-2)), (
        "max abs err", float(jnp.max(jnp.abs(out_text_eval - ref))))

    print("KERNEL_OK")
</pallas_src>

<mosaic_0001>
module attributes {stable_mosaic.version = 11 : i64} {
  func.func @_retrieval_kernel(%arg0: i32, %arg1: memref<1xi32, #tpu.memory_space<smem>>, %arg2: memref<2x256xbf16, #tpu.memory_space<vmem>>, %arg3: memref<1x256x256xbf16, #tpu.memory_space<vmem>>, %arg4: memref<1x256xf32, #tpu.memory_space<vmem>>, %arg5: memref<1x256xf32, #tpu.memory_space<vmem>>, %arg6: memref<2x256xf32, #tpu.memory_space<vmem>>) attributes {dimension_semantics = [#tpu.dimension_semantics<parallel>], iteration_bounds = array<i64: 2>, scalar_prefetch = 1 : i64, scratch_operands = 0 : i64, tpu.core_type = #tpu.core_type<tc>, window_params = [{pipeline_mode = #tpu.pipeline_mode<synchronous>, transform_indices = @transform_0, window_bounds = array<i64: 2, 256>}, {transform_indices = @transform_1, window_bounds = array<i64: 1, 256, 256>}, {transform_indices = @transform_2, window_bounds = array<i64: 1, 256>}, {transform_indices = @transform_3, window_bounds = array<i64: 1, 256>}, {transform_indices = @transform_4, window_bounds = array<i64: 2, 256>}]} {
    %c0 = arith.constant 0 : index
    %c0_0 = arith.constant 0 : index
    %0 = vector.load %arg2[%c0, %c0_0] : memref<2x256xbf16, #tpu.memory_space<vmem>>, vector<2x256xbf16>
    %c0_1 = arith.constant 0 : index
    %c0_2 = arith.constant 0 : index
    %c0_3 = arith.constant 0 : index
    %1 = vector.load %arg3[%c0_1, %c0_2, %c0_3] : memref<1x256x256xbf16, #tpu.memory_space<vmem>>, vector<1x256x256xbf16>
    %2 = vector.shape_cast %1 : vector<1x256x256xbf16> to vector<256x256xbf16>
    %cst = arith.constant dense<0.000000e+00> : vector<2x256xf32>
    %3 = tpu.matmul %0, %2, %cst {dimension_numbers = #tpu.dot_dimension_numbers<[1], [0], [0], [1], [0, 0, 1, 1], [], []>} : vector<2x256xbf16>, vector<256x256xbf16>, vector<2x256xf32> -> vector<2x256xf32>
    %c0_4 = arith.constant 0 : index
    %c0_5 = arith.constant 0 : index
    %4 = vector.load %arg4[%c0_4, %c0_5] : memref<1x256xf32, #tpu.memory_space<vmem>>, vector<1x256xf32>
    %5 = vector.broadcast %4 : vector<1x256xf32> to vector<2x256xf32>
    %6 = arith.mulf %3, %5 : vector<2x256xf32>
    %c0_6 = arith.constant 0 : index
    %c0_7 = arith.constant 0 : index
    %7 = vector.load %arg5[%c0_6, %c0_7] : memref<1x256xf32, #tpu.memory_space<vmem>>, vector<1x256xf32>
    %8 = vector.broadcast %7 : vector<1x256xf32> to vector<2x256xf32>
    %9 = arith.addf %6, %8 : vector<2x256xf32>
    %10 = tpu.iota {dimensions = array<i32: 1>} : vector<2x256xi32>
    %c256_i32 = arith.constant 256 : i32
    %11 = arith.muli %arg0, %c256_i32 : i32
    %12 = vector.broadcast %11 : i32 to vector<2x256xi32>
    %13 = arith.addi %10, %12 : vector<2x256xi32>
    %14 = tpu.iota {dimensions = array<i32: 0>} : vector<2x256xi32>
    %c0_8 = arith.constant 0 : index
    %15 = memref.load %arg1[%c0_8] : memref<1xi32, #tpu.memory_space<smem>>
    %c512_i32 = arith.constant 512 : i32
    %16 = vector.broadcast %c512_i32 : i32 to vector<2x256xi32>
    %17 = arith.muli %14, %16 : vector<2x256xi32>
    %18 = arith.addi %17, %13 : vector<2x256xi32>
    %c-1640531527_i32 = arith.constant -1640531527 : i32
    %19 = arith.muli %15, %c-1640531527_i32 : i32
    %c2135587861_i32 = arith.constant 2135587861 : i32
    %20 = arith.addi %19, %c2135587861_i32 : i32
    %21 = vector.broadcast %20 : i32 to vector<2x256xi32>
    %22 = arith.addi %18, %21 : vector<2x256xi32>
    %c16_i32 = arith.constant 16 : i32
    %23 = vector.broadcast %c16_i32 : i32 to vector<2x256xi32>
    %24 = arith.shrui %22, %23 : vector<2x256xi32>
    %25 = arith.xori %22, %24 : vector<2x256xi32>
    %c-2048144789_i32 = arith.constant -2048144789 : i32
    %26 = vector.broadcast %c-2048144789_i32 : i32 to vector<2x256xi32>
    %27 = arith.muli %25, %26 : vector<2x256xi32>
    %c13_i32 = arith.constant 13 : i32
    %28 = vector.broadcast %c13_i32 : i32 to vector<2x256xi32>
    %29 = arith.shrui %27, %28 : vector<2x256xi32>
    %30 = arith.xori %27, %29 : vector<2x256xi32>
    %c-1028477387_i32 = arith.constant -1028477387 : i32
    %31 = vector.broadcast %c-1028477387_i32 : i32 to vector<2x256xi32>
    %32 = arith.muli %30, %31 : vector<2x256xi32>
    %c16_i32_9 = arith.constant 16 : i32
    %33 = vector.broadcast %c16_i32_9 : i32 to vector<2x256xi32>
    %34 = arith.shrui %32, %33 : vector<2x256xi32>
    %35 = arith.xori %32, %34 : vector<2x256xi32>
    %c8_i32 = arith.constant 8 : i32
    %36 = vector.broadcast %c8_i32 : i32 to vector<2x256xi32>
    %37 = arith.shrui %35, %36 : vector<2x256xi32>
    %c11744051_i32 = arith.constant 11744051 : i32
    %38 = vector.broadcast %c11744051_i32 : i32 to vector<2x256xi32>
    %39 = arith.cmpi slt, %37, %38 : vector<2x256xi32>
    %cst_10 = arith.constant 1.42857146 : f32
    %40 = vector.broadcast %cst_10 : f32 to vector<2x256xf32>
    %41 = arith.mulf %9, %40 : vector<2x256xf32>
    %cst_11 = arith.constant 0.000000e+00 : f32
    %42 = vector.broadcast %cst_11 : f32 to vector<2x256xf32>
    %43 = arith.select %39, %41, %42 : vector<2x256xi1>, vector<2x256xf32>
    %cst_12 = arith.constant 0.000000e+00 : f32
    %44 = vector.broadcast %cst_12 : f32 to vector<2x256xf32>
    %45 = arith.maximumf %43, %44 : vector<2x256xf32>
    %c0_13 = arith.constant 0 : index
    %c0_14 = arith.constant 0 : index
    %46 = vector.load %arg6[%c0_13, %c0_14] : memref<2x256xf32, #tpu.memory_space<vmem>>, vector<2x256xf32>
    tpu.vector_store %arg6[%c0_13, %c0_14], %45 {strides = array<i32>} : memref<2x256xf32, #tpu.memory_space<vmem>>, vector<2x256xf32>,
    return
  }
  func.func @transform_0(%arg0: i32, %arg1: memref<1xi32, #tpu.memory_space<smem>>) -> (i32, i32) {
    %c0_i32 = arith.constant 0 : i32
    %c0_i32_0 = arith.constant 0 : i32
    %c0_i32_1 = arith.constant 0 : i32
    return %c0_i32, %c0_i32_0 : i32, i32
  }
  func.func @transform_1(%arg0: i32, %arg1: memref<1xi32, #tpu.memory_space<smem>>) -> (i32, i32, i32) {
    %c0_i32 = arith.constant 0 : i32
    %c0_i32_0 = arith.constant 0 : i32
    %c0_i32_1 = arith.constant 0 : i32
    return %arg0, %c0_i32, %c0_i32_0 : i32, i32, i32
  }
  func.func @transform_2(%arg0: i32, %arg1: memref<1xi32, #tpu.memory_space<smem>>) -> (i32, i32) {
    %c0_i32 = arith.constant 0 : i32
    %c0_i32_0 = arith.constant 0 : i32
    return %c0_i32, %arg0 : i32, i32
  }
  func.func @transform_3(%arg0: i32, %arg1: memref<1xi32, #tpu.memory_space<smem>>) -> (i32, i32) {
    %c0_i32 = arith.constant 0 : i32
    %c0_i32_0 = arith.constant 0 : i32
    return %c0_i32, %arg0 : i32, i32
  }
  func.func @transform_4(%arg0: i32, %arg1: memref<1xi32, #tpu.memory_space<smem>>) -> (i32, i32) {
    %c0_i32 = arith.constant 0 : i32
    %c0_i32_0 = arith.constant 0 : i32
    return %c0_i32, %arg0 : i32, i32
  }
}

</mosaic_0001>

<llo_original>
// kernel: retrieval_head.1
$region0: #{retrieval_head.1}
  #allocation0 [shape = 'u32[]', space=smem, size = 0x4, offset = 0x4, fixed_abs, tag = 'smem constant byte address 0x4 - core index']
  #allocation1 [shape = 'u32[72,128]{1,0:T(1,128)}', space=vmem, size = 0x9000, scoped, tag = 'internal scratch']
  #allocation2 [shape = 's32[1]{0}', space=sflag, size = 0x4, scoped, tag = 'scoped memory for retrieval_head.1']
  #allocation3 [shape = 's32[1]{0:T(128)S(6)}', space=smem, size = 0x200, scoped, tag = 'prefetched SMEM operand 0']
  %s0 = inlined_call_operand.<no memory space> [shape: s32[1], index: 0, kind: input, shape index: {}]
  %s1 = inlined_call_operand.vmem [shape: bf16[2,256], index: 1, kind: input, shape index: {}]
  %s2 = inlined_call_operand.hbm [shape: bf16[2,256,256], index: 2, kind: input, shape index: {}]
  %s3 = inlined_call_operand.vmem [shape: f32[1,512], index: 3, kind: input, shape index: {}]
  %s4 = inlined_call_operand.vmem [shape: f32[1,512], index: 4, kind: input, shape index: {}]
  %s5 = inlined_call_operand.vmem [shape: f32[2,512], index: 5, kind: output, shape index: {}]
  %s6 = sld [smem:[#allocation0]]
  $region53: #{retrieval_head.1} parent=0
    _
  %s8 = ssub.s32 1, %s6
  %s9 = scalar_select 0, %s8, %s6
  %10 = sst [smem:[#allocation3]] %s0
  $region1: #{retrieval_head.1} parent=0
    #allocation4 [shape = 'u8[262144]{0}', space=vmem, size = 0x40000, scoped, tag = 'input window, operand 2']
    #allocation5 [shape = 's32[2]{0}', space=sflag, size = 0x8, scoped, tag = 'scoped memory for retrieval_head.1']
    %11 = vsyncpa [#allocation5], 0
    %s12 = scalar_lea.sflag [#allocation5], 1
    %13 = vsyncpa %s12, 0
    loop: start=0, step=1, limit=4
    $region2: #{retrieval_head.1} parent=1 // loop_pre_header
      _
    $region3: #{retrieval_head.1} parent=1 // loop_header
      %s15 = sphi 0, %s19
      %p16 = scmp.ge.s32.totalorder %s15, 4
      %s23 = sphi 0, %s23
      %s25 = sphi 0, %s23
      %s26 = sphi 0, %s25
      %s40 = sphi 0, %s26
      %s46 = sphi 0, %s48
      %s49 = sphi 0, %s46
      %s50 = sphi 0, %s49
      %s66 = sphi 0, %s50
      %s72 = sphi 0, %s74
      %s75 = sphi 0, %s72
      %s76 = sphi 0, %s75
      %s92 = sphi 0, %s76
      %s98 = sphi 0, %s100
      %s101 = sphi 0, %s98
      %s102 = sphi 0, %s101
      %s118 = sphi 0, %s102
      %s124 = sphi 0, %s126
      %s127 = sphi 0, %s124
      %s128 = sphi 0, %s127
      %s144 = sphi 0, %s128
    $region4: #{retrieval_head.1} parent=1 // loop_header_branch
      %18 = sbr.rel (%p16) target = $region8
    $region5: #{retrieval_head.1} parent=1 // loop_body
      %s20 = ssub.s32 %s15, 1
      %s21 = ssub.s32 %s15, 2
      %s22 = sadd.s32 %s15, 1
      %s24 = sadd.s32 %s23, 1
      %p27 = scmp.eq.s32.totalorder %s15, 1
      %p28 = scmp.ne.s32.totalorder %s23, %s25
      %p29 = scmp.eq.s32.totalorder %s15, 0
      %p30 = por %p28, %p29
      %p31 = scmp.ne.s32.totalorder %s23, %s25
      %p32 = scmp.eq.s32.totalorder %s20, 1
      %p33 = por %p31, %p32
      %p34 = scmp.ne.s32.totalorder %s25, %s26
      %p35 = scmp.eq.s32.totalorder %s20, 0
      %p36 = por %p34, %p35
      %p37 = scmp.ne.s32.totalorder %s25, %s26
      %p38 = scmp.eq.s32.totalorder %s21, 1
      %p39 = por %p37, %p38
      %p41 = scmp.ne.s32.totalorder %s26, %s40
      %p42 = scmp.eq.s32.totalorder %s21, 0
      %p43 = por %p41, %p42
      %s44 = ssub.s32 %s15, %s22
      %p45 = scmp.eq.s32.totalorder %s44, 0
      %s47 = sadd.s32 %s46, 1
      %s48 = scalar_select %p45, %s46, %s47
      %p51 = pneg %p45
      %p52 = scmp.eq.s32.totalorder %s15, 1
      %p53 = por %p51, %p52
      %p54 = scmp.ne.s32.totalorder %s46, %s49
      %p55 = scmp.eq.s32.totalorder %s15, 0
      %p56 = por %p54, %p55
      %p57 = scmp.ne.s32.totalorder %s46, %s49
      %p58 = scmp.eq.s32.totalorder %s20, 1
      %p59 = por %p57, %p58
      %p60 = scmp.ne.s32.totalorder %s49, %s50
      %p61 = scmp.eq.s32.totalorder %s20, 0
      %p62 = por %p60, %p61
      %p63 = scmp.ne.s32.totalorder %s49, %s50
      %p64 = scmp.eq.s32.totalorder %s21, 1
      %p65 = por %p63, %p64
      %p67 = scmp.ne.s32.totalorder %s50, %s66
      %p68 = scmp.eq.s32.totalorder %s21, 0
      %p69 = por %p67, %p68
      %s70 = ssub.s32 %s15, %s22
      %p71 = scmp.eq.s32.totalorder %s70, 0
      %s73 = sadd.s32 %s72, 1
      %s74 = scalar_select %p71, %s72, %s73
      %p77 = pneg %p71
      %p78 = scmp.eq.s32.totalorder %s15, 1
      %p79 = por %p77, %p78
      %p80 = scmp.ne.s32.totalorder %s72, %s75
      %p81 = scmp.eq.s32.totalorder %s15, 0
      %p82 = por %p80, %p81
      %p83 = scmp.ne.s32.totalorder %s72, %s75
      %p84 = scmp.eq.s32.totalorder %s20, 1
      %p85 = por %p83, %p84
      %p86 = scmp.ne.s32.totalorder %s75, %s76
      %p87 = scmp.eq.s32.totalorder %s20, 0
      %p88 = por %p86, %p87
      %p89 = scmp.ne.s32.totalorder %s75, %s76
      %p90 = scmp.eq.s32.totalorder %s21, 1
      %p91 = por %p89, %p90
      %p93 = scmp.ne.s32.totalorder %s76, %s92
      %p94 = scmp.eq.s32.totalorder %s21, 0
      %p95 = por %p93, %p94
      %s96 = ssub.s32 %s15, %s22
      %p97 = scmp.eq.s32.totalorder %s96, 0
      %s99 = sadd.s32 %s98, 1
      %s100 = scalar_select %p97, %s98, %s99
      %p103 = pneg %p97
      %p104 = scmp.eq.s32.totalorder %s15, 1
      %p105 = por %p103, %p104
      %p106 = scmp.ne.s32.totalorder %s98, %s101
      %p107 = scmp.eq.s32.totalorder %s15, 0
      %p108 = por %p106, %p107
      %p109 = scmp.ne.s32.totalorder %s98, %s101
      %p110 = scmp.eq.s32.totalorder %s20, 1
      %p111 = por %p109, %p110
      %p112 = scmp.ne.s32.totalorder %s101, %s102
      %p113 = scmp.eq.s32.totalorder %s20, 0
      %p114 = por %p112, %p113
      %p115 = scmp.ne.s32.totalorder %s101, %s102
      %p116 = scmp.eq.s32.totalorder %s21, 1
      %p117 = por %p115, %p116
      %p119 = scmp.ne.s32.totalorder %s102, %s118
      %p120 = scmp.eq.s32.totalorder %s21, 0
      %p121 = por %p119, %p120
      %s122 = ssub.s32 %s15, %s22
      %p123 = scmp.eq.s32.totalorder %s122, 0
      %s125 = sadd.s32 %s124, 1
      %s126 = scalar_select %p123, %s124, %s125
      %p129 = pneg %p123
      %p130 = scmp.eq.s32.totalorder %s15, 1
      %p131 = por %p129, %p130
      %p132 = scmp.ne.s32.totalorder %s124, %s127
      %p133 = scmp.eq.s32.totalorder %s15, 0
      %p134 = por %p132, %p133
      %p135 = scmp.ne.s32.totalorder %s124, %s127
      %p136 = scmp.eq.s32.totalorder %s20, 1
      %p137 = por %p135, %p136
      %p138 = scmp.ne.s32.totalorder %s127, %s128
      %p139 = scmp.eq.s32.totalorder %s20, 0
      %p140 = por %p138, %p139
      %p141 = scmp.ne.s32.totalorder %s127, %s128
      %p142 = scmp.eq.s32.totalorder %s21, 1
      %p143 = por %p141, %p142
      %p145 = scmp.ne.s32.totalorder %s128, %s144
      %p146 = scmp.eq.s32.totalorder %s21, 0
      %p147 = por %p145, %p146
      %p148 = scmp.le.s32.totalorder 1, %s15
      %p149 = scmp.lt.s32.totalorder %s15, 3
      %p150 = pnand %p148, %p149
      %p151 = pneg %p150
      // Predicated region
      $region9: #{retrieval_head.1} parent=5 // pred_check
        _
      $region10: #{retrieval_head.1} parent=5 // pred_check_branch
        %153 = sbr.rel (%p150) target = $region12
      $region11: #{retrieval_head.1} parent=5 // pred_region
        %s154 = ssub.s32 %s15, 1
        // Predicated region
        $region13: #{retrieval_head.1} parent=11 // pred_check
          %p155 = pneg %p36
        $region14: #{retrieval_head.1} parent=11 // pred_check_branch
          %157 = sbr.rel (%p155) target = $region16
        $region15: #{retrieval_head.1} parent=11 // pred_region
          _
        $region16: #{retrieval_head.1} parent=11 // pred_fallthru
          _
      $region12: #{retrieval_head.1} parent=5 // pred_fallthru
        _
      %p158 = scmp.lt.s32.totalorder %s15, 2
      // Predicated region
      $region17: #{retrieval_head.1} parent=5 // pred_check
        %p159 = pneg %p158
      $region18: #{retrieval_head.1} parent=5 // pred_check_branch
        %161 = sbr.rel (%p159) target = $region20
      $region19: #{retrieval_head.1} parent=5 // pred_region
        // Predicated region
        $region21: #{retrieval_head.1} parent=19 // pred_check
          %p162 = pneg %p56
        $region22: #{retrieval_head.1} parent=19 // pred_check_branch
          %164 = sbr.rel (%p162) target = $region24
        $region23: #{retrieval_head.1} parent=19 // pred_region
          %s165 = sand.u32 %s46, 1
          %s166 = scalar_lea.sflag [#allocation5], %s165
          %s167 = sand.u32 %s46, 1
          %s168 = smul.addr %s167, 256
          %s169 = scalar_lea.vmem [#allocation4], %s168
          %171 = vsyncadd %s166, 0
          %s172 = smul.addr %s15, 64
          %s173 = smul.addr %s172, 4
          %s174 = scalar_lea.hbm %s2, %s173
          %s175 = sshll.u32 %s174, 4
          %s176 = int_to_ptr.hbm [resolvable:$true] %s175
          %s177 = sshll.u32 %s169, 4
          %s178 = int_to_ptr.vmem [resolvable:$true] %s177
          %183 = dma.hbm_to_vmem [thread:$0]  %s176, 4096, %s178, %s166, 128, 128, 8
        $region24: #{retrieval_head.1} parent=19 // pred_fallthru
          _
        // Predicated region
        $region25: #{retrieval_head.1} parent=19 // pred_check
          %p184 = pneg %p82
        $region26: #{retrieval_head.1} parent=19 // pred_check_branch
          %186 = sbr.rel (%p184) target = $region28
        $region27: #{retrieval_head.1} parent=19 // pred_region
          %s187 = smul.u32 2, %s15
          %p188 = scmp.lt.s32.totalorder %s187, 3
          %s189 = scalar_select %p188, %s187, 3
          %s190 = scalar_lea.vmem %s3, %s189
          %s191 = smul.u32 2, %s15
        $region28: #{retrieval_head.1} parent=19 // pred_fallthru
          _
        // Predicated region
        $region29: #{retrieval_head.1} parent=19 // pred_check
          %p192 = pneg %p108
        $region30: #{retrieval_head.1} parent=19 // pred_check_branch
          %194 = sbr.rel (%p192) target = $region32
        $region31: #{retrieval_head.1} parent=19 // pred_region
          %s195 = smul.u32 2, %s15
          %p196 = scmp.lt.s32.totalorder %s195, 3
          %s197 = scalar_select %p196, %s195, 3
          %s198 = scalar_lea.vmem %s4, %s197
          %s199 = smul.u32 2, %s15
        $region32: #{retrieval_head.1} parent=19 // pred_fallthru
          _
      $region20: #{retrieval_head.1} parent=5 // pred_fallthru
        _
      %p200 = scmp.le.s32.totalorder 1, %s15
      %p201 = scmp.lt.s32.totalorder %s15, 3
      %p202 = pnand %p200, %p201
      %p203 = pneg %p202
      // Predicated region
      $region33: #{retrieval_head.1} parent=5 // pred_check
        _
      $region34: #{retrieval_head.1} parent=5 // pred_check_branch
        %205 = sbr.rel (%p202) target = $region36
      $region35: #{retrieval_head.1} parent=5 // pred_region
        %s206 = ssub.s32 %s15, 1
        %s207 = sand.u32 %s49, 1
        %s208 = scalar_lea.sflag [#allocation5], %s207
        %s209 = sand.u32 %s49, 1
        %s210 = smul.addr %s209, 256
        %s211 = scalar_lea.vmem [#allocation4], %s210
        // Predicated region
        $region37: #{retrieval_head.1} parent=35 // pred_check
          %p212 = pneg %p62
        $region38: #{retrieval_head.1} parent=35 // pred_check_branch
          %214 = sbr.rel (%p212) target = $region40
        $region39: #{retrieval_head.1} parent=35 // pred_region
          %216 = dma.done %s208, 4096
        $region40: #{retrieval_head.1} parent=35 // pred_fallthru
          _
        %p217 = pneg %p36
        %p218 = pneg %p33
        %s219 = sand.u32 %s49, 1
        %s220 = scalar_lea.sflag [#allocation5], %s219
        %s221 = sand.u32 %s49, 1
        %s222 = smul.addr %s221, 256
        %s223 = scalar_lea.vmem [#allocation4], %s222
        %p224 = pneg %p62
        %p225 = pneg %p59
        %s226 = smul.u32 2, %s20
        %p227 = scmp.lt.s32.totalorder %s226, 3
        %s228 = scalar_select %p227, %s226, 3
        %s229 = scalar_lea.vmem %s3, %s228
        %p230 = pneg %p88
        %p231 = pneg %p85
        %s232 = smul.u32 2, %s20
        %p233 = scmp.lt.s32.totalorder %s232, 3
        %s234 = scalar_select %p233, %s232, 3
        %s235 = scalar_lea.vmem %s4, %s234
        %p236 = pneg %p114
        %p237 = pneg %p111
        %p238 = pneg %p140
        %p239 = pneg %p137
        %s240 = smul.u32 2, %s20
        %p241 = scmp.lt.s32.totalorder %s240, 3
        %s242 = scalar_select %p241, %s240, 3
        %s243 = smul.addr %s242, 2
        %s244 = scalar_lea.vmem %s5, %s243
        %s245 = smul.u32 2, %s20
        %p246 = scmp.lt.s32.totalorder %s245, 3
        %s247 = scalar_select %p246, %s245, 3
        %s248 = scalar_lea.vmem %s3, %s247
        %s249 = smul.u32 2, %s20
        %s250 = smul.u32 2, %s20
        %p251 = scmp.lt.s32.totalorder %s250, 3
        %s252 = scalar_select %p251, %s250, 3
        %s253 = scalar_lea.vmem %s4, %s252
        %s254 = smul.u32 2, %s20
        %s255 = smul.u32 2, %s20
        %p256 = scmp.lt.s32.totalorder %s255, 3
        %s257 = scalar_select %p256, %s255, 3
        %s258 = smul.addr %s257, 2
        %s259 = scalar_lea.vmem %s5, %s258
        %s260 = smul.u32 2, %s20
        %v261 = vld [vmem:[%s1] sm:$0x3]
        %v262 = vld [vmem:[%s211] sm:$0xff]
        %v263 = vld [vmem:[%s211 + $0x8] sm:$0xff]
        %v264 = vld [vmem:[%s211 + $0x10] sm:$0xff]
        %v265 = vld [vmem:[%s211 + $0x18] sm:$0xff]
        %v266 = vld [vmem:[%s211 + $0x20] sm:$0xff]
        %v267 = vld [vmem:[%s211 + $0x28] sm:$0xff]
        %v268 = vld [vmem:[%s211 + $0x30] sm:$0xff]
        %v269 = vld [vmem:[%s211 + $0x38] sm:$0xff]
        %v270 = vld [vmem:[%s211 + $0x40] sm:$0xff]
        %v271 = vld [vmem:[%s211 + $0x48] sm:$0xff]
        %v272 = vld [vmem:[%s211 + $0x50] sm:$0xff]
        %v273 = vld [vmem:[%s211 + $0x58] sm:$0xff]
        %v274 = vld [vmem:[%s211 + $0x60] sm:$0xff]
        %v275 = vld [vmem:[%s211 + $0x68] sm:$0xff]
        %v276 = vld [vmem:[%s211 + $0x70] sm:$0xff]
        %v277 = vld [vmem:[%s211 + $0x78] sm:$0xff]
        %v278 = vld [vmem:[%s211 + $0x80] sm:$0xff]
        %v279 = vld [vmem:[%s211 + $0x88] sm:$0xff]
        %v280 = vld [vmem:[%s211 + $0x90] sm:$0xff]
        %v281 = vld [vmem:[%s211 + $0x98] sm:$0xff]
        %v282 = vld [vmem:[%s211 + $0xa0] sm:$0xff]
        %v283 = vld [vmem:[%s211 + $0xa8] sm:$0xff]
        %v284 = vld [vmem:[%s211 + $0xb0] sm:$0xff]
        %v285 = vld [vmem:[%s211 + $0xb8] sm:$0xff]
        %v286 = vld [vmem:[%s211 + $0xc0] sm:$0xff]
        %v287 = vld [vmem:[%s211 + $0xc8] sm:$0xff]
        %v288 = vld [vmem:[%s211 + $0xd0] sm:$0xff]
        %v289 = vld [vmem:[%s211 + $0xd8] sm:$0xff]
        %v290 = vld [vmem:[%s211 + $0xe0] sm:$0xff]
        %v291 = vld [vmem:[%s211 + $0xe8] sm:$0xff]
        %v292 = vld [vmem:[%s211 + $0xf0] sm:$0xff]
        %v293 = vld [vmem:[%s211 + $0xf8] sm:$0xff]
        %295 = vst [vmem:[#allocation1] ss:$9 sm:$0xff] %v261
        %v296 = vld [vmem:[#allocation1] sm:$0xff]
        %v297 = vld [vmem:[#allocation1 + $0x9] sm:$0xff]
        %v332 = vunpack.c.l.b16 %v262
        %v333 = vunpack.c.h.b16 %v262
        %v334 = vunpack.c.l.b16 %v263
        %v335 = vunpack.c.h.b16 %v263
        %v336 = vunpack.c.l.b16 %v264
        %v337 = vunpack.c.h.b16 %v264
        %v338 = vunpack.c.l.b16 %v265
        %v339 = vunpack.c.h.b16 %v265
        %v340 = vunpack.c.l.b16 %v266
        %v341 = vunpack.c.h.b16 %v266
        %v342 = vunpack.c.l.b16 %v267
        %v343 = vunpack.c.h.b16 %v267
        %v344 = vunpack.c.l.b16 %v268
        %v345 = vunpack.c.h.b16 %v268
        %v346 = vunpack.c.l.b16 %v269
        %v347 = vunpack.c.h.b16 %v269
        %v348 = vunpack.c.l.b16 %v270
        %v349 = vunpack.c.h.b16 %v270
        %v350 = vunpack.c.l.b16 %v271
        %v351 = vunpack.c.h.b16 %v271
        %v352 = vunpack.c.l.b16 %v272
        %v353 = vunpack.c.h.b16 %v272
        %v354 = vunpack.c.l.b16 %v273
        %v355 = vunpack.c.h.b16 %v273
        %v356 = vunpack.c.l.b16 %v274
        %v357 = vunpack.c.h.b16 %v274
        %v358 = vunpack.c.l.b16 %v275
        %v359 = vunpack.c.h.b16 %v275
        %v360 = vunpack.c.l.b16 %v276
        %v361 = vunpack.c.h.b16 %v276
        %v362 = vunpack.c.l.b16 %v277
        %v363 = vunpack.c.h.b16 %v277
        %v364 = vunpack.c.l.b16 %v278
        %v365 = vunpack.c.h.b16 %v278
        %v366 = vunpack.c.l.b16 %v279
        %v367 = vunpack.c.h.b16 %v279
        %v368 = vunpack.c.l.b16 %v280
        %v369 = vunpack.c.h.b16 %v280
        %v370 = vunpack.c.l.b16 %v281
        %v371 = vunpack.c.h.b16 %v281
        %v372 = vunpack.c.l.b16 %v282
        %v373 = vunpack.c.h.b16 %v282
        %v374 = vunpack.c.l.b16 %v283
        %v375 = vunpack.c.h.b16 %v283
        %v376 = vunpack.c.l.b16 %v284
        %v377 = vunpack.c.h.b16 %v284
        %v378 = vunpack.c.l.b16 %v285
        %v379 = vunpack.c.h.b16 %v285
        %v380 = vunpack.c.l.b16 %v286
        %v381 = vunpack.c.h.b16 %v286
        %v382 = vunpack.c.l.b16 %v287
        %v383 = vunpack.c.h.b16 %v287
        %v384 = vunpack.c.l.b16 %v288
        %v385 = vunpack.c.h.b16 %v288
        %v386 = vunpack.c.l.b16 %v289
        %v387 = vunpack.c.h.b16 %v289
        %v388 = vunpack.c.l.b16 %v290
        %v389 = vunpack.c.h.b16 %v290
        %v390 = vunpack.c.l.b16 %v291
        %v391 = vunpack.c.h.b16 %v291
        %v392 = vunpack.c.l.b16 %v292
        %v393 = vunpack.c.h.b16 %v292
        %v394 = vunpack.c.l.b16 %v293
        %v395 = vunpack.c.h.b16 %v293
        %v396 = vpack.c.b16 %v334, %v332
        %v397 = vpack.c.b16 %v335, %v333
        %v398 = vpack.c.b16 %v338, %v336
        %v399 = vpack.c.b16 %v339, %v337
        %v400 = vpack.c.b16 %v342, %v340
        %v401 = vpack.c.b16 %v343, %v341
        %v402 = vpack.c.b16 %v346, %v344
        %v403 = vpack.c.b16 %v347, %v345
        %v404 = vpack.c.b16 %v350, %v348
        %v405 = vpack.c.b16 %v351, %v349
        %v406 = vpack.c.b16 %v354, %v352
        %v407 = vpack.c.b16 %v355, %v353
        %v408 = vpack.c.b16 %v358, %v356
        %v409 = vpack.c.b16 %v359, %v357
        %v410 = vpack.c.b16 %v362, %v360
        %v411 = vpack.c.b16 %v363, %v361
        %v412 = vpack.c.b16 %v366, %v364
        %v413 = vpack.c.b16 %v367, %v365
        %v414 = vpack.c.b16 %v370, %v368
        %v415 = vpack.c.b16 %v371, %v369
        %v416 = vpack.c.b16 %v374, %v372
        %v417 = vpack.c.b16 %v375, %v373
        %v418 = vpack.c.b16 %v378, %v376
        %v419 = vpack.c.b16 %v379, %v377
        %v420 = vpack.c.b16 %v382, %v380
        %v421 = vpack.c.b16 %v383, %v381
        %v422 = vpack.c.b16 %v386, %v384
        %v423 = vpack.c.b16 %v387, %v385
        %v424 = vpack.c.b16 %v390, %v388
        %v425 = vpack.c.b16 %v391, %v389
        %v426 = vpack.c.b16 %v394, %v392
        %v427 = vpack.c.b16 %v395, %v393
        %460 = vmatpush.bf16.msra.mxu0 %v410
        %461 = vmatpush.bf16.msra.mxu0 %v408
        %462 = vmatpush.bf16.msra.mxu0 %v406
        %463 = vmatpush.bf16.msra.mxu0 %v404
        %464 = vmatpush.bf16.msra.mxu0 %v402
        %465 = vmatpush.bf16.msra.mxu0 %v400
        %466 = vmatpush.bf16.msra.mxu0 %v398
        %467 = vmatpush.bf16.msra.mxu0 %v396
        %468 = vmatmul.bf16.gmra.mxu0 %v296
        %v469 = vpop.f32.mrf.mxu0
        %v470 = vadd.f32 0.0, %v469
        %v471 = vpop.f32.mrf.mxu0
        %472 = vdwg.mxu0
        %473 = vmatpush.bf16.msra.mxu0 %v426
        %474 = vmatpush.bf16.msra.mxu0 %v424
        %475 = vmatpush.bf16.msra.mxu0 %v422
        %476 = vmatpush.bf16.msra.mxu0 %v420
        %477 = vmatpush.bf16.msra.mxu0 %v418
        %478 = vmatpush.bf16.msra.mxu0 %v416
        %479 = vmatpush.bf16.msra.mxu0 %v414
        %480 = vmatpush.bf16.msra.mxu0 %v412
        %481 = vmatmul.bf16.gmra.mxu0 %v297
        %v482 = vpop.f32.mrf.mxu0
        %v483 = vadd.f32 %v470, %v482
        %v484 = vpop.f32.mrf.mxu0
        %485 = vdwg.mxu0
        %486 = vmatpush.bf16.msra.mxu0 %v411
        %487 = vmatpush.bf16.msra.mxu0 %v409
        %488 = vmatpush.bf16.msra.mxu0 %v407
        %489 = vmatpush.bf16.msra.mxu0 %v405
        %490 = vmatpush.bf16.msra.mxu0 %v403
        %491 = vmatpush.bf16.msra.mxu0 %v401
        %492 = vmatpush.bf16.msra.mxu0 %v399
        %493 = vmatpush.bf16.msra.mxu0 %v397
        %494 = vmatmul.bf16.gmra.mxu0 %v296
        %v495 = vpop.f32.mrf.mxu0
        %v496 = vadd.f32 0.0, %v495
        %v497 = vpop.f32.mrf.mxu0
        %498 = vdwg.mxu0
        %499 = vmatpush.bf16.msra.mxu0 %v427
        %500 = vmatpush.bf16.msra.mxu0 %v425
        %501 = vmatpush.bf16.msra.mxu0 %v423
        %502 = vmatpush.bf16.msra.mxu0 %v421
        %503 = vmatpush.bf16.msra.mxu0 %v419
        %504 = vmatpush.bf16.msra.mxu0 %v417
        %505 = vmatpush.bf16.msra.mxu0 %v415
        %506 = vmatpush.bf16.msra.mxu0 %v413
        %507 = vmatmul.bf16.gmra.mxu0 %v297
        %v508 = vpop.f32.mrf.mxu0
        %v509 = vadd.f32 %v496, %v508
        %v510 = vpop.f32.mrf.mxu0
        %511 = vdwg.mxu0
        %v512 = vld [vmem:[%s248] sm:$0x3]
        %v514 = vperm.slane %v512, 0
        %v515 = vperm.slane %v512, 1
        %v518 = vmul.f32 %v483, %v514
        %v519 = vmul.f32 %v509, %v515
        %v520 = vld [vmem:[%s253] sm:$0x3]
        %v522 = vperm.slane %v520, 0
        %v523 = vperm.slane %v520, 1
        %v526 = vadd.f32 %v518, %v522
        %v527 = vadd.f32 %v519, %v523
        %v528 = vlaneseq
        %v529 = vand.u32 %v528, 127
        %v530 = vadd.s32 %v529, 128
        %s531 = smul.u32 %s20, 256
        %v532 = vstv %s531
        %v533 = vadd.s32 %v529, %v532
        %v534 = vadd.s32 %v530, %v532
        %v535 = vlaneseq
        %v536 = vshrl.u32 %v535, 7
        %s537 = sld [smem:[#allocation3]]
        %v538 = vmul.u32 %v536, 512
        %v539 = vadd.s32 %v538, %v533
        %v540 = vadd.s32 %v538, %v534
        %s541 = smul.u32 %s537, 2654435769
        %s542 = sadd.s32 %s541, 2135587861
        %v543 = vstv %s542
        %v544 = vadd.s32 %v539, %v543
        %v545 = vadd.s32 %v540, %v543
        %v546 = vshrl.u32 %v544, 16
        %v547 = vshrl.u32 %v545, 16
        %v548 = vxor.u32 %v544, %v546
        %v549 = vxor.u32 %v545, %v547
        %v550 = vmul.u32 %v548, 2246822507
        %v551 = vmul.u32 %v549, 2246822507
        %v552 = vshrl.u32 %v550, 13
        %v553 = vshrl.u32 %v551, 13
        %v554 = vxor.u32 %v550, %v552
        %v555 = vxor.u32 %v551, %v553
        %v556 = vmul.u32 %v554, 3266489909
        %v557 = vmul.u32 %v555, 3266489909
        %v558 = vshrl.u32 %v556, 16
        %v559 = vshrl.u32 %v557, 16
        %v560 = vxor.u32 %v556, %v558
        %v561 = vxor.u32 %v557, %v559
        %v562 = vshrl.u32 %v560, 8
        %v563 = vshrl.u32 %v561, 8
        %vm564 = vcmp.lt.s32.totalorder %v562, 11744051
        %vm565 = vcmp.lt.s32.totalorder %v563, 11744051
        %v566 = vmul.f32 %v526, 1.4285715
        %v567 = vmul.f32 %v527, 1.4285715
        %v568 = vsel %vm564, %v566, 0.0
        %v569 = vsel %vm565, %v567, 0.0
        %v570 = vmax.f32 %v568, 0.0
        %v571 = vmax.f32 %v569, 0.0
        %v574 = vrot.slane %v571, 6
        %vm575 = vcmask 1041408
        %v576 = vsel %vm575, %v570, %v574
        %578 = vst [vmem:[%s259] sm:$0xf] %v576
        %s579 = smul.u32 2, %s20
        %p580 = scmp.lt.s32.totalorder %s579, 3
        %s581 = scalar_select %p580, %s579, 3
        %s582 = smul.addr %s581, 2
        %s583 = scalar_lea.vmem %s5, %s582
        // Predicated region
        $region41: #{retrieval_head.1} parent=35 // pred_check
          %p584 = pneg %p137
        $region42: #{retrieval_head.1} parent=35 // pred_check_branch
          %586 = sbr.rel (%p584) target = $region44
        $region43: #{retrieval_head.1} parent=35 // pred_region
          %s587 = smul.u32 2, %s20
        $region44: #{retrieval_head.1} parent=35 // pred_fallthru
          _
      $region36: #{retrieval_head.1} parent=5 // pred_fallthru
        _
      %p588 = scmp.le.s32.totalorder 2, %s15
      // Predicated region
      $region45: #{retrieval_head.1} parent=5 // pred_check
        %p589 = pneg %p588
      $region46: #{retrieval_head.1} parent=5 // pred_check_branch
        %591 = sbr.rel (%p589) target = $region48
      $region47: #{retrieval_head.1} parent=5 // pred_region
        %s592 = ssub.s32 %s15, 2
        // Predicated region
        $region49: #{retrieval_head.1} parent=47 // pred_check
          %p593 = pneg %p143
        $region50: #{retrieval_head.1} parent=47 // pred_check_branch
          %595 = sbr.rel (%p593) target = $region52
        $region51: #{retrieval_head.1} parent=47 // pred_region
          %s596 = smul.u32 2, %s21
          %p597 = scmp.lt.s32.totalorder %s596, 3
          %s598 = scalar_select %p597, %s596, 3
          %s599 = smul.addr %s598, 2
          %s600 = scalar_lea.vmem %s5, %s599
        $region52: #{retrieval_head.1} parent=47 // pred_fallthru
          _
      $region48: #{retrieval_head.1} parent=5 // pred_fallthru
        _
    $region6: #{retrieval_head.1} parent=1 // loop_footer
      %s19 = sadd.s32 1, %s15
    $region7: #{retrieval_head.1} parent=1 // loop_footer_branch
      %14 = sbr.rel target = $region3
    $region8: #{retrieval_head.1} parent=1 // loop_exit
      _
    %601 = vsyncpa [#allocation5], 1
    %s602 = scalar_lea.sflag [#allocation5], 1
    %603 = vsyncpa %s602, 1

</llo_original>
